<compile_context>
chip_gen: v5e
topology: v5e:2x2
jax: 0.10.0
libtpu: 0.0.40
codegen_flags: <defaults>
</compile_context>

<pallas_src>
import functools

import jax
import jax.numpy as jnp
from jax.experimental import pallas as pl
from jax.experimental.pallas import tpu as pltpu


def _round_up(x, m):
    return ((x + m - 1) // m) * m


def _merge_mlp_kernel(x1_ref, x2_ref, w1a_ref, w1b_ref, b1_ref, w2_ref, b2_ref,
                      z_ref):
    """Fused (split fc1) -> ReLU -> (dropout: identity in eval) -> fc2."""
    # First layer: concat fused as a split matmul, f32 accumulation on the MXU.
    h = jnp.dot(x1_ref[...], w1a_ref[...], preferred_element_type=jnp.float32)
    h = h + jnp.dot(x2_ref[...], w1b_ref[...],
                    preferred_element_type=jnp.float32)
    h = h + b1_ref[...]
    h = jnp.maximum(h, 0.0)                       # ReLU (VPU)
    # F.dropout with training=False is the identity, so nothing to do here.
    # Second layer (cast h to the weight dtype so bf16 weights use the bf16 MXU
    # path; no-op for f32 weights).
    z = jnp.dot(h.astype(w2_ref.dtype), w2_ref[...],
                preferred_element_type=jnp.float32)
    z = z + b2_ref[...]
    z_ref[...] = z.astype(z_ref.dtype)            # lane-dense (padded) store


def _choose_batch_tile(batch, max_rows=1024):
    """Largest multiple-of-8 row tile <= max_rows; returns (tile, padded_batch)."""
    b8 = _round_up(batch, 8)
    if b8 <= max_rows:
        return b8, b8                 # single grid step for small batches
    tb = max_rows
    return tb, _round_up(batch, tb)


def merge_layer_forward(x1, x2, params, *, max_rows_per_tile=1024):
    """MergeLayer.forward for non_linear=True. Returns (z, z_walk=None)."""
    batch, d1 = x1.shape
    d2 = x2.shape[-1]
    w1a, w1b = params["w1a"], params["w1b"]
    b1, w2, b2 = params["b1"], params["w2"], params["b2"]
    dim4 = params["dim4"]                   # true (unpadded) output width
    d3p = w1a.shape[1]                      # padded hidden width (mult of 128)
    d4p = w2.shape[1]                       # padded output width (mult of 128)

    tb, padded_batch = _choose_batch_tile(batch, max_rows_per_tile)
    if padded_batch != batch:
        pad = padded_batch - batch
        x1 = jnp.pad(x1, ((0, pad), (0, 0)))
        x2 = jnp.pad(x2, ((0, pad), (0, 0)))

    grid = (padded_batch // tb,)

    z = pl.pallas_call(
        _merge_mlp_kernel,
        out_shape=jax.ShapeDtypeStruct((padded_batch, d4p), x1.dtype),
        grid_spec=pltpu.PrefetchScalarGridSpec(
            num_scalar_prefetch=0,
            grid=grid,
            in_specs=[
                # Activations: tiled over the batch (double-buffered by Pallas).
                pl.BlockSpec((tb, d1), lambda i: (i, 0)),
                pl.BlockSpec((tb, d2), lambda i: (i, 0)),
                # Weights / biases: same block every step -> stay VMEM-resident.
                pl.BlockSpec((d1, d3p), lambda i: (0, 0)),
                pl.BlockSpec((d2, d3p), lambda i: (0, 0)),
                pl.BlockSpec((1, d3p), lambda i: (0, 0)),
                pl.BlockSpec((d3p, d4p), lambda i: (0, 0)),
                pl.BlockSpec((1, d4p), lambda i: (0, 0)),
            ],
            out_specs=pl.BlockSpec((tb, d4p), lambda i: (i, 0)),
        ),
        compiler_params=pltpu.CompilerParams(
            # Batch tiles are independent -> shard across TensorCores (v7x).
            dimension_semantics=("parallel",),
            vmem_limit_bytes=32 * 1024 * 1024,
        ),
    )(x1, x2, w1a, w1b, b1, w2, b2)

    # Slice away the batch padding and the lane padding of dim4.
    return z[:batch, :dim4], None


def _xavier_normal(key, fan_in, fan_out):
    """torch.nn.init.xavier_normal_ equivalent, stored as (in, out)."""
    std = (2.0 / (fan_in + fan_out)) ** 0.5
    return jax.random.normal(key, (fan_in, fan_out), dtype=jnp.float32) * std


def init_merge_layer_params(key, dim1, dim2, dim3, dim4, dtype=jnp.float32):
    """Build kernel-ready params: split fc1, transposed layout, lane-padded.

    Padding to multiples of 128 (with zeros) is done once here, never per call.
    The zero-padded hidden columns have zero weight + zero bias -> relu gives 0,
    and the corresponding (zero) rows of w2 contribute nothing, so numerics are
    identical to the unpadded model.
    """
    d3p = _round_up(dim3, 128)
    d4p = _round_up(dim4, 128)
    k1, k2, k3, k4 = jax.random.split(key, 4)

    # fc1: Linear(dim1 + dim2, dim3), xavier_normal weight, PyTorch default bias.
    w1 = _xavier_normal(k1, dim1 + dim2, dim3)
    b1 = (jax.random.uniform(k2, (1, dim3), jnp.float32, -1.0, 1.0)
          / jnp.sqrt(jnp.float32(dim1 + dim2)))
    # fc2: Linear(dim3, dim4), xavier_normal weight.
    w2 = _xavier_normal(k3, dim3, dim4)
    b2 = (jax.random.uniform(k4, (1, dim4), jnp.float32, -1.0, 1.0)
          / jnp.sqrt(jnp.float32(dim3)))

    params = {
        # Split first-layer weight (concat fusion) + lane padding of dim3.
        "w1a": jnp.pad(w1[:dim1], ((0, 0), (0, d3p - dim3))).astype(dtype),
        "w1b": jnp.pad(w1[dim1:], ((0, 0), (0, d3p - dim3))).astype(dtype),
        "b1": jnp.pad(b1, ((0, 0), (0, d3p - dim3))),                    # f32
        "w2": jnp.pad(w2, ((0, d3p - dim3), (0, d4p - dim4))).astype(dtype),
        "b2": jnp.pad(b2, ((0, 0), (0, d4p - dim4))),                    # f32
        "dim4": dim4,
    }
    # Unpadded reference copies (for the correctness check only).
    ref = {"w1": w1, "b1": b1, "w2": w2, "b2": b2}
    return params, ref


if __name__ == "__main__":
    # Small deterministic example consistent with MergeLayer(dim1, dim2, dim3, dim4).
    dim1, dim2, dim3, dim4 = 16, 16, 32, 8
    batch = 8

    root = jax.random.PRNGKey(0)
    kp, kx1, kx2 = jax.random.split(root, 3)

    params, ref = init_merge_layer_params(kp, dim1, dim2, dim3, dim4,
                                          dtype=jnp.float32)
    x1 = jax.random.normal(kx1, (batch, dim1), dtype=jnp.float32)
    x2 = jax.random.normal(kx2, (batch, dim2), dtype=jnp.float32)

    z, z_walk = merge_layer_forward(x1, x2, params)
    z = jax.block_until_ready(z)

    # Pure-JAX reference (unpadded weights, eval-mode dropout == identity).
    x = jnp.concatenate([x1, x2], axis=-1)
    h_ref = jnp.maximum(x @ ref["w1"] + ref["b1"], 0.0)
    z_ref = h_ref @ ref["w2"] + ref["b2"]

    assert z.shape == (batch, dim4)
    assert z_walk is None
    assert jnp.allclose(z, z_ref, atol=1e-5, rtol=1e-5)

    print("KERNEL_OK")
</pallas_src>

<mosaic_0001>
module attributes {stable_mosaic.version = 11 : i64} {
  func.func @_merge_mlp_kernel(%arg0: i32, %arg1: memref<8x16xf32, #tpu.memory_space<vmem>>, %arg2: memref<8x16xf32, #tpu.memory_space<vmem>>, %arg3: memref<16x128xf32, #tpu.memory_space<vmem>>, %arg4: memref<16x128xf32, #tpu.memory_space<vmem>>, %arg5: memref<1x128xf32, #tpu.memory_space<vmem>>, %arg6: memref<128x128xf32, #tpu.memory_space<vmem>>, %arg7: memref<1x128xf32, #tpu.memory_space<vmem>>, %arg8: memref<8x128xf32, #tpu.memory_space<vmem>>) attributes {dimension_semantics = [#tpu.dimension_semantics<parallel>], iteration_bounds = array<i64: 1>, scalar_prefetch = 0 : i64, scratch_operands = 0 : i64, tpu.core_type = #tpu.core_type<tc>, window_params = [{transform_indices = @transform_0, window_bounds = array<i64: 8, 16>}, {transform_indices = @transform_1, window_bounds = array<i64: 8, 16>}, {pipeline_mode = #tpu.pipeline_mode<synchronous>, transform_indices = @transform_2, window_bounds = array<i64: 16, 128>}, {pipeline_mode = #tpu.pipeline_mode<synchronous>, transform_indices = @transform_3, window_bounds = array<i64: 16, 128>}, {pipeline_mode = #tpu.pipeline_mode<synchronous>, transform_indices = @transform_4, window_bounds = array<i64: 1, 128>}, {pipeline_mode = #tpu.pipeline_mode<synchronous>, transform_indices = @transform_5, window_bounds = array<i64: 128, 128>}, {pipeline_mode = #tpu.pipeline_mode<synchronous>, transform_indices = @transform_6, window_bounds = array<i64: 1, 128>}, {transform_indices = @transform_7, window_bounds = array<i64: 8, 128>}]} {
    %c0 = arith.constant 0 : index
    %c0_0 = arith.constant 0 : index
    %0 = vector.load %arg1[%c0, %c0_0] : memref<8x16xf32, #tpu.memory_space<vmem>>, vector<8x16xf32>
    %c0_1 = arith.constant 0 : index
    %c0_2 = arith.constant 0 : index
    %1 = vector.load %arg3[%c0_1, %c0_2] : memref<16x128xf32, #tpu.memory_space<vmem>>, vector<16x128xf32>
    %cst = arith.constant dense<0.000000e+00> : vector<8x128xf32>
    %2 = tpu.matmul %0, %1, %cst {dimension_numbers = #tpu.dot_dimension_numbers<[1], [0], [0], [1], [0, 0, 1, 1], [], []>} : vector<8x16xf32>, vector<16x128xf32>, vector<8x128xf32> -> vector<8x128xf32>
    %c0_3 = arith.constant 0 : index
    %c0_4 = arith.constant 0 : index
    %3 = vector.load %arg2[%c0_3, %c0_4] : memref<8x16xf32, #tpu.memory_space<vmem>>, vector<8x16xf32>
    %c0_5 = arith.constant 0 : index
    %c0_6 = arith.constant 0 : index
    %4 = vector.load %arg4[%c0_5, %c0_6] : memref<16x128xf32, #tpu.memory_space<vmem>>, vector<16x128xf32>
    %cst_7 = arith.constant dense<0.000000e+00> : vector<8x128xf32>
    %5 = tpu.matmul %3, %4, %cst_7 {dimension_numbers = #tpu.dot_dimension_numbers<[1], [0], [0], [1], [0, 0, 1, 1], [], []>} : vector<8x16xf32>, vector<16x128xf32>, vector<8x128xf32> -> vector<8x128xf32>
    %6 = arith.addf %2, %5 : vector<8x128xf32>
    %c0_8 = arith.constant 0 : index
    %c0_9 = arith.constant 0 : index
    %7 = vector.load %arg5[%c0_8, %c0_9] : memref<1x128xf32, #tpu.memory_space<vmem>>, vector<1x128xf32>
    %8 = vector.broadcast %7 : vector<1x128xf32> to vector<8x128xf32>
    %9 = arith.addf %6, %8 : vector<8x128xf32>
    %cst_10 = arith.constant 0.000000e+00 : f32
    %10 = vector.broadcast %cst_10 : f32 to vector<8x128xf32>
    %11 = arith.maximumf %9, %10 : vector<8x128xf32>
    %c0_11 = arith.constant 0 : index
    %c0_12 = arith.constant 0 : index
    %12 = vector.load %arg6[%c0_11, %c0_12] : memref<128x128xf32, #tpu.memory_space<vmem>>, vector<128x128xf32>
    %cst_13 = arith.constant dense<0.000000e+00> : vector<8x128xf32>
    %13 = tpu.matmul %11, %12, %cst_13 {dimension_numbers = #tpu.dot_dimension_numbers<[1], [0], [0], [1], [0, 0, 1, 1], [], []>} : vector<8x128xf32>, vector<128x128xf32>, vector<8x128xf32> -> vector<8x128xf32>
    %c0_14 = arith.constant 0 : index
    %c0_15 = arith.constant 0 : index
    %14 = vector.load %arg7[%c0_14, %c0_15] : memref<1x128xf32, #tpu.memory_space<vmem>>, vector<1x128xf32>
    %15 = vector.broadcast %14 : vector<1x128xf32> to vector<8x128xf32>
    %16 = arith.addf %13, %15 : vector<8x128xf32>
    %c0_16 = arith.constant 0 : index
    %c0_17 = arith.constant 0 : index
    %17 = vector.load %arg8[%c0_16, %c0_17] : memref<8x128xf32, #tpu.memory_space<vmem>>, vector<8x128xf32>
    tpu.vector_store %arg8[%c0_16, %c0_17], %16 {strides = array<i32>} : memref<8x128xf32, #tpu.memory_space<vmem>>, vector<8x128xf32>,
    return
  }
  func.func @transform_0(%arg0: i32) -> (i32, i32) {
    %c0_i32 = arith.constant 0 : i32
    %c0_i32_0 = arith.constant 0 : i32
    return %arg0, %c0_i32 : i32, i32
  }
  func.func @transform_1(%arg0: i32) -> (i32, i32) {
    %c0_i32 = arith.constant 0 : i32
    %c0_i32_0 = arith.constant 0 : i32
    return %arg0, %c0_i32 : i32, i32
  }
  func.func @transform_2(%arg0: i32) -> (i32, i32) {
    %c0_i32 = arith.constant 0 : i32
    %c0_i32_0 = arith.constant 0 : i32
    %c0_i32_1 = arith.constant 0 : i32
    return %c0_i32, %c0_i32_0 : i32, i32
  }
  func.func @transform_3(%arg0: i32) -> (i32, i32) {
    %c0_i32 = arith.constant 0 : i32
    %c0_i32_0 = arith.constant 0 : i32
    %c0_i32_1 = arith.constant 0 : i32
    return %c0_i32, %c0_i32_0 : i32, i32
  }
  func.func @transform_4(%arg0: i32) -> (i32, i32) {
    %c0_i32 = arith.constant 0 : i32
    %c0_i32_0 = arith.constant 0 : i32
    %c0_i32_1 = arith.constant 0 : i32
    return %c0_i32, %c0_i32_0 : i32, i32
  }
  func.func @transform_5(%arg0: i32) -> (i32, i32) {
    %c0_i32 = arith.constant 0 : i32
    %c0_i32_0 = arith.constant 0 : i32
    %c0_i32_1 = arith.constant 0 : i32
    return %c0_i32, %c0_i32_0 : i32, i32
  }
  func.func @transform_6(%arg0: i32) -> (i32, i32) {
    %c0_i32 = arith.constant 0 : i32
    %c0_i32_0 = arith.constant 0 : i32
    %c0_i32_1 = arith.constant 0 : i32
    return %c0_i32, %c0_i32_0 : i32, i32
  }
  func.func @transform_7(%arg0: i32) -> (i32, i32) {
    %c0_i32 = arith.constant 0 : i32
    %c0_i32_0 = arith.constant 0 : i32
    return %arg0, %c0_i32 : i32, i32
  }
}

</mosaic_0001>

<llo_original>
// kernel: tpu_custom_call.1
$region0: #{tpu_custom_call.1}
  #allocation0 [shape = 'u32[]', space=smem, size = 0x4, offset = 0x4, fixed_abs, tag = 'smem constant byte address 0x4 - core index']
  #allocation1 [shape = 'u32[72,128]{1,0:T(1,128)}', space=vmem, size = 0x9000, scoped, tag = 'internal scratch']
  %s0 = inlined_call_operand.hbm [shape: f32[8,16], index: 0, kind: input, shape index: {}]
  %s1 = inlined_call_operand.hbm [shape: f32[8,16], index: 1, kind: input, shape index: {}]
  %s2 = inlined_call_operand.hbm [shape: f32[16,128], index: 2, kind: input, shape index: {}]
  %s3 = inlined_call_operand.hbm [shape: f32[16,128], index: 3, kind: input, shape index: {}]
  %s4 = inlined_call_operand.vmem [shape: f32[1,128], index: 4, kind: input, shape index: {}]
  %s5 = inlined_call_operand.hbm [shape: f32[128,128], index: 5, kind: input, shape index: {}]
  %s6 = inlined_call_operand.vmem [shape: f32[1,128], index: 6, kind: input, shape index: {}]
  %s7 = inlined_call_operand.hbm [shape: f32[8,128], index: 7, kind: output, shape index: {}]
  %s8 = sld [smem:[#allocation0]]
  $region58: #{tpu_custom_call.1} parent=0
    _
  %s10 = ssub.s32 1, %s8
  %s11 = scalar_select 0, %s10, %s8
  $region1: #{tpu_custom_call.1} parent=0
    #allocation2 [shape = 'u8[4096]{0}', space=vmem, size = 0x1000, scoped, tag = 'input window, operand 0, single buffered']
    #allocation3 [shape = 's32[1]{0}', space=sflag, size = 0x4, scoped, tag = 'scoped memory for tpu_custom_call.1']
    #allocation4 [shape = 's32[1]{0}', space=sflag, size = 0x4, scoped, tag = 'scoped memory for tpu_custom_call.1']
    #allocation5 [shape = 'u8[4096]{0}', space=vmem, size = 0x1000, scoped, tag = 'input window, operand 1, single buffered']
    #allocation6 [shape = 's32[1]{0}', space=sflag, size = 0x4, scoped, tag = 'scoped memory for tpu_custom_call.1']
    #allocation7 [shape = 'u8[8192]{0}', space=vmem, size = 0x2000, scoped, tag = 'input window, operand 2, single buffered']
    #allocation8 [shape = 'u8[8192]{0}', space=vmem, size = 0x2000, scoped, tag = 'input window, operand 3, single buffered']
    #allocation9 [shape = 's32[1]{0}', space=sflag, size = 0x4, scoped, tag = 'scoped memory for tpu_custom_call.1']
    #allocation10 [shape = 'u8[65536]{0}', space=vmem, size = 0x10000, scoped, tag = 'input window, operand 5, single buffered']
    #allocation11 [shape = 'u8[4096]{0}', space=vmem, size = 0x1000, scoped, tag = 'output window, operand 0, single buffered']
    %12 = vsyncpa [#allocation3], 0
    %13 = vsyncpa [#allocation6], 0
    %14 = vsyncpa [#allocation9], 0
    %15 = vsyncpa [#allocation4], 0
    // Predicated region
    $region2: #{tpu_custom_call.1} parent=1 // pred_check
      _
    $region3: #{tpu_custom_call.1} parent=1 // pred_check_branch
      %17 = sbr.rel (0) target = $region5
    $region4: #{tpu_custom_call.1} parent=1 // pred_region
      %19 = vsyncadd [#allocation3], 0
      %s21 = sshll.u32 %s0, 4
      %s22 = int_to_ptr.hbm [resolvable:$true] %s21
      %s23 = sshll.u32 [#allocation2], 4
      %s24 = int_to_ptr.vmem [resolvable:$true] %s23
      %26 = dma.hbm_to_vmem [thread:$0]  %s22, 128, %s24, [#allocation3]
    $region5: #{tpu_custom_call.1} parent=1 // pred_fallthru
      _
    // Predicated region
    $region6: #{tpu_custom_call.1} parent=1 // pred_check
      _
    $region7: #{tpu_custom_call.1} parent=1 // pred_check_branch
      %28 = sbr.rel (0) target = $region9
    $region8: #{tpu_custom_call.1} parent=1 // pred_region
      %30 = vsyncadd [#allocation6], 0
      %s32 = sshll.u32 %s1, 4
      %s33 = int_to_ptr.hbm [resolvable:$true] %s32
      %s34 = sshll.u32 [#allocation5], 4
      %s35 = int_to_ptr.vmem [resolvable:$true] %s34
      %37 = dma.hbm_to_vmem [thread:$0]  %s33, 128, %s35, [#allocation6]
    $region9: #{tpu_custom_call.1} parent=1 // pred_fallthru
      _
    // Predicated region
    $region10: #{tpu_custom_call.1} parent=1 // pred_check
      _
    $region11: #{tpu_custom_call.1} parent=1 // pred_check_branch
      %39 = sbr.rel (0) target = $region13
    $region12: #{tpu_custom_call.1} parent=1 // pred_region
      %41 = vsyncadd [#allocation6], 0
      %s42 = sshll.u32 %s2, 4
      %s43 = int_to_ptr.hbm [resolvable:$true] %s42
      %s44 = sshll.u32 [#allocation7], 4
      %s45 = int_to_ptr.vmem [resolvable:$true] %s44
      %50 = dma.hbm_to_vmem [thread:$0]  %s43, 256, %s45, [#allocation6], 128, 128, 8
    $region13: #{tpu_custom_call.1} parent=1 // pred_fallthru
      _
    // Predicated region
    $region14: #{tpu_custom_call.1} parent=1 // pred_check
      _
    $region15: #{tpu_custom_call.1} parent=1 // pred_check_branch
      %52 = sbr.rel (0) target = $region17
    $region16: #{tpu_custom_call.1} parent=1 // pred_region
      %54 = vsyncadd [#allocation9], 0
      %s55 = sshll.u32 %s3, 4
      %s56 = int_to_ptr.hbm [resolvable:$true] %s55
      %s57 = sshll.u32 [#allocation8], 4
      %s58 = int_to_ptr.vmem [resolvable:$true] %s57
      %63 = dma.hbm_to_vmem [thread:$0]  %s56, 256, %s58, [#allocation9], 128, 128, 8
    $region17: #{tpu_custom_call.1} parent=1 // pred_fallthru
      _
    // Predicated region
    $region18: #{tpu_custom_call.1} parent=1 // pred_check
      _
    $region19: #{tpu_custom_call.1} parent=1 // pred_check_branch
      %65 = sbr.rel (0) target = $region21
    $region20: #{tpu_custom_call.1} parent=1 // pred_region
      _
    $region21: #{tpu_custom_call.1} parent=1 // pred_fallthru
      _
    // Predicated region
    $region22: #{tpu_custom_call.1} parent=1 // pred_check
      _
    $region23: #{tpu_custom_call.1} parent=1 // pred_check_branch
      %67 = sbr.rel (0) target = $region25
    $region24: #{tpu_custom_call.1} parent=1 // pred_region
      %69 = vsyncadd [#allocation9], 0
      %s70 = sshll.u32 %s5, 4
      %s71 = int_to_ptr.hbm [resolvable:$true] %s70
      %s72 = sshll.u32 [#allocation10], 4
      %s73 = int_to_ptr.vmem [resolvable:$true] %s72
      %78 = dma.hbm_to_vmem [thread:$0]  %s71, 2048, %s73, [#allocation9], 128, 128, 8
    $region25: #{tpu_custom_call.1} parent=1 // pred_fallthru
      _
    // Predicated region
    $region26: #{tpu_custom_call.1} parent=1 // pred_check
      _
    $region27: #{tpu_custom_call.1} parent=1 // pred_check_branch
      %80 = sbr.rel (0) target = $region29
    $region28: #{tpu_custom_call.1} parent=1 // pred_region
      _
    $region29: #{tpu_custom_call.1} parent=1 // pred_fallthru
      _
    // Predicated region
    $region30: #{tpu_custom_call.1} parent=1 // pred_check
      _
    $region31: #{tpu_custom_call.1} parent=1 // pred_check_branch
      %82 = sbr.rel (0) target = $region33
    $region32: #{tpu_custom_call.1} parent=1 // pred_region
      %84 = dma.done [#allocation3], 128
    $region33: #{tpu_custom_call.1} parent=1 // pred_fallthru
      _
    // Predicated region
    $region34: #{tpu_custom_call.1} parent=1 // pred_check
      _
    $region35: #{tpu_custom_call.1} parent=1 // pred_check_branch
      %86 = sbr.rel (0) target = $region37
    $region36: #{tpu_custom_call.1} parent=1 // pred_region
      %88 = dma.done [#allocation6], 128
    $region37: #{tpu_custom_call.1} parent=1 // pred_fallthru
      _
    // Predicated region
    $region38: #{tpu_custom_call.1} parent=1 // pred_check
      _
    $region39: #{tpu_custom_call.1} parent=1 // pred_check_branch
      %90 = sbr.rel (0) target = $region41
    $region40: #{tpu_custom_call.1} parent=1 // pred_region
      %92 = dma.done [#allocation6], 256
    $region41: #{tpu_custom_call.1} parent=1 // pred_fallthru
      _
    // Predicated region
    $region42: #{tpu_custom_call.1} parent=1 // pred_check
      _
    $region43: #{tpu_custom_call.1} parent=1 // pred_check_branch
      %94 = sbr.rel (0) target = $region45
    $region44: #{tpu_custom_call.1} parent=1 // pred_region
      %96 = dma.done [#allocation9], 256
    $region45: #{tpu_custom_call.1} parent=1 // pred_fallthru
      _
    // Predicated region
    $region46: #{tpu_custom_call.1} parent=1 // pred_check
      _
    $region47: #{tpu_custom_call.1} parent=1 // pred_check_branch
      %98 = sbr.rel (0) target = $region49
    $region48: #{tpu_custom_call.1} parent=1 // pred_region
      %100 = dma.done [#allocation9], 2048
    $region49: #{tpu_custom_call.1} parent=1 // pred_fallthru
      _
    %v101 = vld [vmem:[#allocation2] sm:$0xff]
    %v102 = vld [vmem:[#allocation7] sm:$0xff]
    %v103 = vld [vmem:[#allocation7 + $0x8] sm:$0xff]
    %v104 = vld [vmem:[#allocation5] sm:$0xff]
    %v105 = vld [vmem:[#allocation8] sm:$0xff]
    %v106 = vld [vmem:[#allocation8 + $0x8] sm:$0xff]
    %vm107 = vcmask 130048
    %v109 = vsel %vm107, %v104, 0
    %111 = vmatpush.msra.mxu0 0.0
    %112 = vmatpush.msra.mxu0 0.0
    %113 = vmatpush.msra.mxu0 0.0
    %114 = vmatpush.msra.mxu0 0.0
    %115 = vmatpush.msra.mxu0 0.0
    %116 = vmatpush.msra.mxu0 0.0
    %117 = vmatpush.msra.mxu0 0.0
    %118 = vmatpush.msra.mxu0 0.0
    %119 = vmatpush.msra.mxu0 0.0
    %120 = vmatpush.msra.mxu0 0.0
    %121 = vmatpush.msra.mxu0 0.0
    %122 = vmatpush.msra.mxu0 0.0
    %123 = vmatpush.msra.mxu0 0.0
    %124 = vmatpush.msra.mxu0 0.0
    %125 = vmatpush.msra.mxu0 %v106
    %126 = vmatpush.msra.mxu0 %v105
    %127 = vmatmul.f32.gmra.mxu0 %v109
    %v128 = vpop.f32.mrf.mxu0
    %v129 = vadd.f32 0.0, %v128
    %130 = vdwg.mxu0
    %v132 = vsel %vm107, %v101, 0
    %134 = vmatpush.msra.mxu0 0.0
    %135 = vmatpush.msra.mxu0 0.0
    %136 = vmatpush.msra.mxu0 0.0
    %137 = vmatpush.msra.mxu0 0.0
    %138 = vmatpush.msra.mxu0 0.0
    %139 = vmatpush.msra.mxu0 0.0
    %140 = vmatpush.msra.mxu0 0.0
    %141 = vmatpush.msra.mxu0 0.0
    %142 = vmatpush.msra.mxu0 0.0
    %143 = vmatpush.msra.mxu0 0.0
    %144 = vmatpush.msra.mxu0 0.0
    %145 = vmatpush.msra.mxu0 0.0
    %146 = vmatpush.msra.mxu0 0.0
    %147 = vmatpush.msra.mxu0 0.0
    %148 = vmatpush.msra.mxu0 %v103
    %149 = vmatpush.msra.mxu0 %v102
    %150 = vmatmul.f32.gmra.mxu0 %v132
    %v151 = vpop.f32.mrf.mxu0
    %v152 = vadd.f32 %v129, %v151
    %153 = vdwg.mxu0
    %v154 = vld [vmem:[%s4] sm:$0x1]
    %v156 = vperm.slane %v154, 0
    %v158 = vadd.f32 %v152, %v156
    %v159 = vmax.f32 %v158, 0.0
    %v160 = vld [vmem:[#allocation10] sm:$0xff]
    %v161 = vld [vmem:[#allocation10 + $0x8] sm:$0xff]
    %v162 = vld [vmem:[#allocation10 + $0x10] sm:$0xff]
    %v163 = vld [vmem:[#allocation10 + $0x18] sm:$0xff]
    %v164 = vld [vmem:[#allocation10 + $0x20] sm:$0xff]
    %v165 = vld [vmem:[#allocation10 + $0x28] sm:$0xff]
    %v166 = vld [vmem:[#allocation10 + $0x30] sm:$0xff]
    %v167 = vld [vmem:[#allocation10 + $0x38] sm:$0xff]
    %v168 = vld [vmem:[#allocation10 + $0x40] sm:$0xff]
    %v169 = vld [vmem:[#allocation10 + $0x48] sm:$0xff]
    %v170 = vld [vmem:[#allocation10 + $0x50] sm:$0xff]
    %v171 = vld [vmem:[#allocation10 + $0x58] sm:$0xff]
    %v172 = vld [vmem:[#allocation10 + $0x60] sm:$0xff]
    %v173 = vld [vmem:[#allocation10 + $0x68] sm:$0xff]
    %v174 = vld [vmem:[#allocation10 + $0x70] sm:$0xff]
    %v175 = vld [vmem:[#allocation10 + $0x78] sm:$0xff]
    %v176 = vld [vmem:[%s6] sm:$0x1]
    %v178 = vperm.slane %v176, 0
    %180 = vmatpush.msra.mxu0 %v175
    %181 = vmatpush.msra.mxu0 %v174
    %182 = vmatpush.msra.mxu0 %v173
    %183 = vmatpush.msra.mxu0 %v172
    %184 = vmatpush.msra.mxu0 %v171
    %185 = vmatpush.msra.mxu0 %v170
    %186 = vmatpush.msra.mxu0 %v169
    %187 = vmatpush.msra.mxu0 %v168
    %188 = vmatpush.msra.mxu0 %v167
    %189 = vmatpush.msra.mxu0 %v166
    %190 = vmatpush.msra.mxu0 %v165
    %191 = vmatpush.msra.mxu0 %v164
    %192 = vmatpush.msra.mxu0 %v163
    %193 = vmatpush.msra.mxu0 %v162
    %194 = vmatpush.msra.mxu0 %v161
    %195 = vmatpush.msra.mxu0 %v160
    %196 = vmatmul.f32.gmra.mxu0 %v159
    %v197 = vpop.f32.mrf.mxu0
    %v198 = vadd.f32 %v178, %v197
    %199 = vdwg.mxu0
    %200 = vst [vmem:[#allocation11] sm:$0xff] %v198
    // Predicated region
    $region50: #{tpu_custom_call.1} parent=1 // pred_check
      _
    $region51: #{tpu_custom_call.1} parent=1 // pred_check_branch
      %202 = sbr.rel (0) target = $region53
    $region52: #{tpu_custom_call.1} parent=1 // pred_region
      %204 = vsyncadd [#allocation4], 0
      %s206 = sshll.u32 [#allocation11], 4
      %s207 = int_to_ptr.vmem [resolvable:$true] %s206
      %s208 = sshll.u32 %s7, 4
      %s209 = int_to_ptr.hbm [resolvable:$true] %s208
      %211 = dma.vmem_to_hbm [thread:$0]  %s207, 128, %s209, [#allocation4]
    $region53: #{tpu_custom_call.1} parent=1 // pred_fallthru
      _
    // Predicated region
    $region54: #{tpu_custom_call.1} parent=1 // pred_check
      _
    $region55: #{tpu_custom_call.1} parent=1 // pred_check_branch
      %213 = sbr.rel (0) target = $region57
    $region56: #{tpu_custom_call.1} parent=1 // pred_region
      %215 = dma.done [#allocation4], 128
    $region57: #{tpu_custom_call.1} parent=1 // pred_fallthru
      _
    %216 = vsyncpa [#allocation3], 1
    %217 = vsyncpa [#allocation6], 1
    %218 = vsyncpa [#allocation9], 1
    %219 = vsyncpa [#allocation4], 1

</llo_original>
